<compile_context>
chip_gen: v5e
topology: v5e:2x2
jax: 0.10.0
libtpu: 0.0.40
codegen_flags: <defaults>
</compile_context>

<pallas_src>
import functools

import jax
import jax.numpy as jnp
from jax import lax
from jax.experimental import pallas as pl
from jax.experimental.pallas import tpu as pltpu

_H = 32          # hidden width fixed by the module: Linear(bottleneck_dim, 32)
_LANE = 128      # TPU lane width


def _cdiv(a, b):
    return -(-a // b)


def _round_up(x, m):
    return _cdiv(x, m) * m


def _dal_kernel(b2_ref, feat_ref, y_ref, w1_ref, b1_ref, w2_ref,
                o_ref, acc_ref, *, valid_b, tile_b, steps_per_slice):
    """One batch tile per (slice, step) grid point.

    b2_ref  : (1,)      f32   SMEM  second-layer bias (scalar)
    feat_ref: (TB, D)   nat.  VMEM  features tile (native dtype: f32 / bf16)
    y_ref   : (1, TB)   f32   VMEM  domain labels tile (lane-dense row)
    w1_ref  : (H, D)    nat.  VMEM  first Linear weight (PyTorch layout, resident)
    b1_ref  : (H, 1)    f32   VMEM  first Linear bias (column, resident)
    w2_ref  : (H, 1)    f32   VMEM  second Linear weight (column, resident)
    o_ref   : (1, 128)  f32   VMEM  per-slice loss sum (broadcast over lanes)
    acc_ref : (1, 1)    f32   VMEM  running per-slice sum of per-example losses
    """
    c = pl.program_id(0)                 # batch slice (parallel across cores)
    i = pl.program_id(1)                 # step within the slice (reduction)
    step = c * steps_per_slice + i

    @pl.when(i == 0)
    def _():
        acc_ref[...] = jnp.zeros_like(acc_ref)

    # Linear1 + ReLU, computed transposed so the batch lands on the lane axis:
    #   h[h, b] = sum_d w1[h, d] * feat[b, d]     (MXU, f32 accumulation)
    h = lax.dot_general(
        w1_ref[...], feat_ref[...],
        dimension_numbers=(((1,), (1,)), ((), ())),
        preferred_element_type=jnp.float32)                       # (H, TB)
    h = jnp.maximum(h + b1_ref[...], 0.0)

    # Linear2 (32 -> 1): VPU multiply + sublane reduction (no width-1 matmul).
    z = jnp.sum(h * w2_ref[...], axis=0, keepdims=True) + b2_ref[0]   # (1, TB)

    # Numerically stable BCE-with-logits: max(z,0) - z*y + log1p(exp(-|z|)).
    y = y_ref[...]
    per_ex = jnp.maximum(z, 0.0) - z * y + jnp.log1p(jnp.exp(-jnp.abs(z)))

    # Mask lanes past the end of the batch (partial trailing tile / padded
    # slice steps).  Select, not multiply, so garbage rows cannot propagate.
    col = lax.broadcasted_iota(jnp.int32, (1, tile_b), 1) + step * tile_b
    per_ex = jnp.where(col < valid_b, per_ex, 0.0)

    acc_ref[...] += jnp.sum(per_ex, axis=1, keepdims=True)

    @pl.when(i == steps_per_slice - 1)
    def _():
        o_ref[...] = jnp.broadcast_to(acc_ref[...], o_ref.shape)


def _tile_config(batch, dim, feat_itemsize, max_block_b=None):
    """Pick (tile_b, num_slices, steps_per_slice, vmem_limit_bytes)."""
    try:
        cap = int(pltpu.get_tpu_info().vmem_capacity_bytes)
    except Exception:          # conservative fallback (v7x-sized)
        cap = 64 << 20
    budget = cap // 2
    # Resident operands still get two pipeline buffers; count them explicitly.
    fixed = 2 * (_H * dim * feat_itemsize + 2 * _H * 4)           # w1, b1, w2
    per_row = 2 * (dim * feat_itemsize + 4) + 4 * _H              # feat + label + h
    tb_cap = max(_LANE, (budget - fixed) // per_row)
    tb_cap = min(tb_cap, 4096)      # per-step overhead well amortized by here
    if max_block_b is not None:
        tb_cap = min(tb_cap, max(1, int(max_block_b)))

    if batch <= tb_cap:
        # Single tile covering the whole batch: block dims equal array dims,
        # no alignment constraint, one grid step.
        tb, num_slices, steps_per_slice = batch, 1, 1
    else:
        tb = max(_LANE, (min(tb_cap, _round_up(batch, _LANE)) // _LANE) * _LANE)
        total_steps = _cdiv(batch, tb)
        num_slices = 2 if total_steps >= 2 else 1    # v7x: one slice per TC
        steps_per_slice = _cdiv(total_steps, num_slices)

    est = fixed + tb * per_row + (2 << 20)
    vmem_limit = int(min(int(cap * 0.9), max(2 * est, 32 << 20)))
    return tb, num_slices, steps_per_slice, vmem_limit


@functools.partial(
    jax.jit,
    static_argnames=("tb", "num_slices", "steps_per_slice", "vmem_limit"))
def _dal_call(features, domain_labels, fc1_w, fc1_b, fc2_w, fc2_b, *,
              tb, num_slices, steps_per_slice, vmem_limit):
    batch, dim = features.shape
    hid = fc1_w.shape[0]

    # Tiny operand prep only (no HBM pass over `features`).
    labels_row = domain_labels.astype(jnp.float32).reshape(1, batch)
    w1 = fc1_w.astype(features.dtype)                    # (H, D) PyTorch layout
    b1_col = fc1_b.astype(jnp.float32).reshape(hid, 1)
    w2_col = fc2_w.astype(jnp.float32).reshape(hid, 1)
    b2_s = fc2_b.astype(jnp.float32).reshape(1)

    last_blk = max(_cdiv(batch, tb) - 1, 0)

    def feat_map(c, i):
        return (jnp.minimum(c * steps_per_slice + i, last_blk), 0)

    def label_map(c, i):
        return (0, jnp.minimum(c * steps_per_slice + i, last_blk))

    def const_map(c, i):
        return (0, 0)

    kernel = functools.partial(_dal_kernel, valid_b=batch, tile_b=tb,
                               steps_per_slice=steps_per_slice)

    out = pl.pallas_call(
        kernel,
        out_shape=jax.ShapeDtypeStruct((1, num_slices * _LANE), jnp.float32),
        grid=(num_slices, steps_per_slice),
        in_specs=[
            pl.BlockSpec(memory_space=pltpu.MemorySpace.SMEM),   # b2 (1,)
            pl.BlockSpec((tb, dim), feat_map),                   # features tile
            pl.BlockSpec((1, tb), label_map),                    # labels (lane-dense)
            pl.BlockSpec((hid, dim), const_map),                 # w1 (resident)
            pl.BlockSpec((hid, 1), const_map),                   # b1 (resident)
            pl.BlockSpec((hid, 1), const_map),                   # w2 (resident)
        ],
        out_specs=pl.BlockSpec((1, _LANE), lambda c, i: (0, c)),
        scratch_shapes=[pltpu.VMEM((1, 1), jnp.float32)],
        compiler_params=pltpu.CompilerParams(
            dimension_semantics=("parallel", "arbitrary"),
            vmem_limit_bytes=int(vmem_limit)),
    )(b2_s, features, labels_row, w1, b1_col, w2_col)

    partial_sums = out.reshape(num_slices, _LANE)[:, 0]
    return jnp.sum(partial_sums) / batch


def domain_adversarial_loss(features, domain_labels, fc1_w, fc1_b, fc2_w, fc2_b,
                            *, max_block_b=None):
    """loss = BCEWithLogits(Linear2(ReLU(Linear1(features))).squeeze(), labels).

    Weights use the PyTorch nn.Linear layout:
      fc1_w: (32, bottleneck_dim), fc1_b: (32,), fc2_w: (1, 32), fc2_b: (1,).
    `features` is consumed in its native dtype (f32 or bf16).
    """
    batch, dim = features.shape
    tb, ns, sps, vmem_limit = _tile_config(
        batch, dim, jnp.dtype(features.dtype).itemsize, max_block_b)
    return _dal_call(features, domain_labels, fc1_w, fc1_b, fc2_w, fc2_b,
                     tb=tb, num_slices=ns, steps_per_slice=sps,
                     vmem_limit=vmem_limit)


def _reference(features, domain_labels, fc1_w, fc1_b, fc2_w, fc2_b):
    """Pure-JAX reference, identical math to the PyTorch module (f32)."""
    x = features.astype(jnp.float32)
    h = jnp.maximum(x @ fc1_w.T + fc1_b, 0.0)
    z = (h @ fc2_w.T).reshape(-1) + fc2_b[0]
    y = domain_labels.astype(jnp.float32)
    return jnp.mean(jnp.maximum(z, 0.0) - z * y + jnp.log1p(jnp.exp(-jnp.abs(z))))


if __name__ == "__main__":
    key = jax.random.PRNGKey(0)
    kf, kl, k1, k2, k3, k4, kf2, kl2 = jax.random.split(key, 8)

    # --- small-shape check (module-sized): batch=2, bottleneck_dim=64 ---
    B, D, H = 2, 64, _H
    features = jax.random.normal(kf, (B, D), jnp.float32)
    domain_labels = (jax.random.uniform(kl, (B,)) < 0.5).astype(jnp.float32)
    fc1_w = jax.random.normal(k1, (H, D), jnp.float32) * 0.1
    fc1_b = jax.random.normal(k2, (H,), jnp.float32) * 0.1
    fc2_w = jax.random.normal(k3, (1, H), jnp.float32) * 0.1
    fc2_b = jax.random.normal(k4, (1,), jnp.float32) * 0.1

    loss = jax.block_until_ready(
        domain_adversarial_loss(features, domain_labels,
                                fc1_w, fc1_b, fc2_w, fc2_b))
    ref = _reference(features, domain_labels, fc1_w, fc1_b, fc2_w, fc2_b)
    assert loss.shape == () and loss.dtype == jnp.float32
    assert bool(jnp.isfinite(loss))
    assert bool(jnp.allclose(loss, ref, atol=1e-5, rtol=1e-5)), (loss, ref)

    # --- larger unaligned bf16 batch: exercises multi-tile accumulation, the
    #     partial-trailing-tile mask and the two-slice (dual-core) reduction.
    B2 = 700
    features2 = jax.random.normal(kf2, (B2, D), jnp.float32).astype(jnp.bfloat16)
    domain_labels2 = (jax.random.uniform(kl2, (B2,)) < 0.5).astype(jnp.float32)
    loss2 = jax.block_until_ready(
        domain_adversarial_loss(features2, domain_labels2, fc1_w, fc1_b,
                                fc2_w, fc2_b, max_block_b=256))
    ref2 = _reference(features2, domain_labels2, fc1_w, fc1_b, fc2_w, fc2_b)
    assert bool(jnp.isfinite(loss2))
    assert bool(jnp.allclose(loss2, ref2, atol=2e-2, rtol=2e-2)), (loss2, ref2)

    print("KERNEL_OK")
</pallas_src>

<mosaic_0001>
module attributes {stable_mosaic.version = 11 : i64} {
  func.func @_dal_kernel(%arg0: i32, %arg1: i32, %arg2: memref<1xf32, #tpu.memory_space<smem>>, %arg3: memref<2x64xf32, #tpu.memory_space<vmem>>, %arg4: memref<1x2xf32, #tpu.memory_space<vmem>>, %arg5: memref<32x64xf32, #tpu.memory_space<vmem>>, %arg6: memref<32x1xf32, #tpu.memory_space<vmem>>, %arg7: memref<32x1xf32, #tpu.memory_space<vmem>>, %arg8: memref<1x128xf32, #tpu.memory_space<vmem>>, %arg9: memref<1x1xf32, #tpu.memory_space<vmem>>) attributes {dimension_semantics = [#tpu.dimension_semantics<parallel>, #tpu.dimension_semantics<arbitrary>], iteration_bounds = array<i64: 1, 1>, scalar_prefetch = 0 : i64, scratch_operands = 1 : i64, tpu.core_type = #tpu.core_type<tc>, window_params = [{transform_indices = @transform_0, window_bounds = array<i64: 1>}, {transform_indices = @transform_1, window_bounds = array<i64: 2, 64>}, {transform_indices = @transform_2, window_bounds = array<i64: 1, 2>}, {pipeline_mode = #tpu.pipeline_mode<synchronous>, transform_indices = @transform_3, window_bounds = array<i64: 32, 64>}, {pipeline_mode = #tpu.pipeline_mode<synchronous>, transform_indices = @transform_4, window_bounds = array<i64: 32, 1>}, {pipeline_mode = #tpu.pipeline_mode<synchronous>, transform_indices = @transform_5, window_bounds = array<i64: 32, 1>}, {transform_indices = @transform_6, window_bounds = array<i64: 1, 128>}]} {
    %c1_i32 = arith.constant 1 : i32
    %0 = arith.muli %arg0, %c1_i32 : i32
    %1 = arith.addi %0, %arg1 : i32
    %c0_i32 = arith.constant 0 : i32
    %2 = arith.cmpi eq, %arg1, %c0_i32 : i32
    %3 = arith.extui %2 : i1 to i32
    %c0_i32_0 = arith.constant 0 : i32
    %4 = arith.cmpi ne, %3, %c0_i32_0 : i32
    scf.if %4 {
      %cst_24 = arith.constant 0.000000e+00 : f32
      %48 = vector.broadcast %cst_24 : f32 to vector<1x1xf32>
      %c0_25 = arith.constant 0 : index
      %c0_26 = arith.constant 0 : index
      %49 = vector.load %arg9[%c0_25, %c0_26] : memref<1x1xf32, #tpu.memory_space<vmem>>, vector<1x1xf32>
      tpu.vector_store %arg9[%c0_25, %c0_26], %48 {strides = array<i32>} : memref<1x1xf32, #tpu.memory_space<vmem>>, vector<1x1xf32>,
    } else {
    }
    %c0 = arith.constant 0 : index
    %c0_1 = arith.constant 0 : index
    %5 = vector.load %arg5[%c0, %c0_1] : memref<32x64xf32, #tpu.memory_space<vmem>>, vector<32x64xf32>
    %c0_2 = arith.constant 0 : index
    %c0_3 = arith.constant 0 : index
    %6 = vector.load %arg3[%c0_2, %c0_3] : memref<2x64xf32, #tpu.memory_space<vmem>>, vector<2x64xf32>
    %cst = arith.constant dense<0.000000e+00> : vector<32x2xf32>
    %7 = tpu.matmul %5, %6, %cst {dimension_numbers = #tpu.dot_dimension_numbers<[1], [1], [0], [0], [0, 0, 1, 0], [], []>} : vector<32x64xf32>, vector<2x64xf32>, vector<32x2xf32> -> vector<32x2xf32>
    %c0_4 = arith.constant 0 : index
    %c0_5 = arith.constant 0 : index
    %8 = vector.load %arg6[%c0_4, %c0_5] : memref<32x1xf32, #tpu.memory_space<vmem>>, vector<32x1xf32>
    %9 = vector.broadcast %8 : vector<32x1xf32> to vector<32x2xf32>
    %10 = arith.addf %7, %9 : vector<32x2xf32>
    %cst_6 = arith.constant 0.000000e+00 : f32
    %11 = vector.broadcast %cst_6 : f32 to vector<32x2xf32>
    %12 = arith.maximumf %10, %11 : vector<32x2xf32>
    %c0_7 = arith.constant 0 : index
    %c0_8 = arith.constant 0 : index
    %13 = vector.load %arg7[%c0_7, %c0_8] : memref<32x1xf32, #tpu.memory_space<vmem>>, vector<32x1xf32>
    %14 = vector.broadcast %13 : vector<32x1xf32> to vector<32x2xf32>
    %15 = arith.mulf %12, %14 : vector<32x2xf32>
    %cst_9 = arith.constant dense<0.000000e+00> : vector<2xf32>
    %16 = vector.multi_reduction <add>, %15, %cst_9 [0] : vector<32x2xf32> to vector<2xf32>
    %17 = vector.shape_cast %16 : vector<2xf32> to vector<1x2xf32>
    %c0_10 = arith.constant 0 : index
    %18 = memref.load %arg2[%c0_10] : memref<1xf32, #tpu.memory_space<smem>>
    %19 = vector.broadcast %18 : f32 to vector<1x2xf32>
    %20 = arith.addf %17, %19 : vector<1x2xf32>
    %c0_11 = arith.constant 0 : index
    %c0_12 = arith.constant 0 : index
    %21 = vector.load %arg4[%c0_11, %c0_12] : memref<1x2xf32, #tpu.memory_space<vmem>>, vector<1x2xf32>
    %cst_13 = arith.constant 0.000000e+00 : f32
    %22 = vector.broadcast %cst_13 : f32 to vector<1x2xf32>
    %23 = arith.maximumf %20, %22 : vector<1x2xf32>
    %24 = arith.mulf %20, %21 : vector<1x2xf32>
    %25 = arith.subf %23, %24 : vector<1x2xf32>
    %26 = math.absf %20 : vector<1x2xf32>
    %cst_14 = arith.constant 0.000000e+00 : f32
    %27 = vector.broadcast %cst_14 : f32 to vector<1x2xf32>
    %28 = arith.subf %27, %26 : vector<1x2xf32>
    %29 = math.exp %28 : vector<1x2xf32>
    %30 = math.log1p %29 : vector<1x2xf32>
    %31 = arith.addf %25, %30 : vector<1x2xf32>
    %32 = tpu.iota {dimensions = array<i32: 1>} : vector<1x2xi32>
    %c2_i32 = arith.constant 2 : i32
    %33 = arith.muli %1, %c2_i32 : i32
    %34 = vector.broadcast %33 : i32 to vector<1x2xi32>
    %35 = arith.addi %32, %34 : vector<1x2xi32>
    %c2_i32_15 = arith.constant 2 : i32
    %36 = vector.broadcast %c2_i32_15 : i32 to vector<1x2xi32>
    %37 = arith.cmpi slt, %35, %36 : vector<1x2xi32>
    %cst_16 = arith.constant 0.000000e+00 : f32
    %38 = vector.broadcast %cst_16 : f32 to vector<1x2xf32>
    %39 = arith.select %37, %31, %38 : vector<1x2xi1>, vector<1x2xf32>
    %c0_17 = arith.constant 0 : index
    %c0_18 = arith.constant 0 : index
    %40 = vector.load %arg9[%c0_17, %c0_18] : memref<1x1xf32, #tpu.memory_space<vmem>>, vector<1x1xf32>
    %cst_19 = arith.constant dense<0.000000e+00> : vector<1xf32>
    %41 = vector.multi_reduction <add>, %39, %cst_19 [1] : vector<1x2xf32> to vector<1xf32>
    %42 = vector.shape_cast %41 : vector<1xf32> to vector<1x1xf32>
    %43 = arith.addf %40, %42 : vector<1x1xf32>
    %c0_20 = arith.constant 0 : index
    %c0_21 = arith.constant 0 : index
    %44 = vector.load %arg9[%c0_20, %c0_21] : memref<1x1xf32, #tpu.memory_space<vmem>>, vector<1x1xf32>
    tpu.vector_store %arg9[%c0_20, %c0_21], %43 {strides = array<i32>} : memref<1x1xf32, #tpu.memory_space<vmem>>, vector<1x1xf32>,
    %c0_i32_22 = arith.constant 0 : i32
    %45 = arith.cmpi eq, %arg1, %c0_i32_22 : i32
    %46 = arith.extui %45 : i1 to i32
    %c0_i32_23 = arith.constant 0 : i32
    %47 = arith.cmpi ne, %46, %c0_i32_23 : i32
    scf.if %47 {
      %c0_24 = arith.constant 0 : index
      %c0_25 = arith.constant 0 : index
      %48 = vector.load %arg9[%c0_24, %c0_25] : memref<1x1xf32, #tpu.memory_space<vmem>>, vector<1x1xf32>
      %49 = vector.shape_cast %48 : vector<1x1xf32> to vector<1x1xf32>
      %50 = vector.broadcast %49 : vector<1x1xf32> to vector<1x128xf32>
      %c0_26 = arith.constant 0 : index
      %c0_27 = arith.constant 0 : index
      %51 = vector.load %arg8[%c0_26, %c0_27] : memref<1x128xf32, #tpu.memory_space<vmem>>, vector<1x128xf32>
      tpu.vector_store %arg8[%c0_26, %c0_27], %50 {strides = array<i32>} : memref<1x128xf32, #tpu.memory_space<vmem>>, vector<1x128xf32>,
    } else {
    }
    return
  }
  func.func @transform_0(%arg0: i32, %arg1: i32) -> i32 {
    %c0_i32 = arith.constant 0 : i32
    %c0_i32_0 = arith.constant 0 : i32
    return %c0_i32 : i32
  }
  func.func @transform_1(%arg0: i32, %arg1: i32) -> (i32, i32) {
    %c1_i32 = arith.constant 1 : i32
    %0 = arith.muli %arg0, %c1_i32 : i32
    %1 = arith.addi %0, %arg1 : i32
    %c0_i32 = arith.constant 0 : i32
    %2 = arith.minsi %1, %c0_i32 : i32
    %c0_i32_0 = arith.constant 0 : i32
    %c0_i32_1 = arith.constant 0 : i32
    return %2, %c0_i32_0 : i32, i32
  }
  func.func @transform_2(%arg0: i32, %arg1: i32) -> (i32, i32) {
    %c1_i32 = arith.constant 1 : i32
    %0 = arith.muli %arg0, %c1_i32 : i32
    %1 = arith.addi %0, %arg1 : i32
    %c0_i32 = arith.constant 0 : i32
    %2 = arith.minsi %1, %c0_i32 : i32
    %c0_i32_0 = arith.constant 0 : i32
    %c0_i32_1 = arith.constant 0 : i32
    return %c0_i32_0, %2 : i32, i32
  }
  func.func @transform_3(%arg0: i32, %arg1: i32) -> (i32, i32) {
    %c0_i32 = arith.constant 0 : i32
    %c0_i32_0 = arith.constant 0 : i32
    %c0_i32_1 = arith.constant 0 : i32
    return %c0_i32, %c0_i32_0 : i32, i32
  }
  func.func @transform_4(%arg0: i32, %arg1: i32) -> (i32, i32) {
    %c0_i32 = arith.constant 0 : i32
    %c0_i32_0 = arith.constant 0 : i32
    %c0_i32_1 = arith.constant 0 : i32
    return %c0_i32, %c0_i32_0 : i32, i32
  }
  func.func @transform_5(%arg0: i32, %arg1: i32) -> (i32, i32) {
    %c0_i32 = arith.constant 0 : i32
    %c0_i32_0 = arith.constant 0 : i32
    %c0_i32_1 = arith.constant 0 : i32
    return %c0_i32, %c0_i32_0 : i32, i32
  }
  func.func @transform_6(%arg0: i32, %arg1: i32) -> (i32, i32) {
    %c0_i32 = arith.constant 0 : i32
    %c0_i32_0 = arith.constant 0 : i32
    return %c0_i32, %arg0 : i32, i32
  }
}

</mosaic_0001>

<llo_original>
// kernel: _dal_call.1
$region0: #{_dal_call.1}
  #allocation0 [shape = 'u32[]', space=smem, size = 0x4, offset = 0x4, fixed_abs, tag = 'smem constant byte address 0x4 - core index']
  #allocation1 [shape = 'u32[72,128]{1,0:T(1,128)}', space=vmem, size = 0x9000, scoped, tag = 'internal scratch']
  #allocation2 [shape = 'f32[1,1]{1,0:T(1,128)}', space=vmem, size = 0x200, scoped, tag = 'scratch operand']
  #allocation3 [shape = 'f32[1]{0:T(128)S(6)}', space=smem, size = 0x200, scoped, tag = 'scoped memory for _dal_call.1']
  %s0 = inlined_call_operand.<no memory space> [shape: f32[1], index: 0, kind: input, shape index: {}]
  %s1 = inlined_call_operand.vmem [shape: f32[2,64], index: 1, kind: input, shape index: {}]
  %s2 = inlined_call_operand.vmem [shape: f32[1,2], index: 2, kind: input, shape index: {}]
  %s3 = inlined_call_operand.vmem [shape: f32[32,64], index: 3, kind: input, shape index: {}]
  %s4 = inlined_call_operand.vmem [shape: f32[32,1], index: 4, kind: input, shape index: {}]
  %s5 = inlined_call_operand.vmem [shape: f32[32,1], index: 5, kind: input, shape index: {}]
  %s6 = inlined_call_operand.vmem [shape: f32[1,128], index: 6, kind: output, shape index: {}]
  %s7 = sld [smem:[#allocation0]]
  $region42: #{_dal_call.1} parent=0
    _
  %s9 = ssub.s32 1, %s7
  %s10 = scalar_select 0, %s9, %s7
  %11 = sst [smem:[#allocation3]] %s0
  // Predicated region
  $region2: #{_dal_call.1} parent=0 // pred_check
    _
  $region3: #{_dal_call.1} parent=0 // pred_check_branch
    %13 = sbr.rel (0) target = $region5
  $region4: #{_dal_call.1} parent=0 // pred_region
    _
  $region5: #{_dal_call.1} parent=0 // pred_fallthru
    _
  // Predicated region
  $region6: #{_dal_call.1} parent=0 // pred_check
    _
  $region7: #{_dal_call.1} parent=0 // pred_check_branch
    %15 = sbr.rel (0) target = $region9
  $region8: #{_dal_call.1} parent=0 // pred_region
    %s16 = sadd.s32 0, 0
    %p17 = scmp.lt.s32.totalorder %s16, 0
    %s18 = scalar_select %p17, %s16, 0
    %p19 = scmp.lt.s32.totalorder %s18, 0
    %s20 = scalar_select %p19, %s18, 0
    %s21 = smul.addr %s20, 2
    %s22 = scalar_lea.vmem %s1, %s21
    %s23 = sadd.s32 0, 0
    %p24 = scmp.lt.s32.totalorder %s23, 0
    %s25 = scalar_select %p24, %s23, 0
  $region9: #{_dal_call.1} parent=0 // pred_fallthru
    _
  // Predicated region
  $region10: #{_dal_call.1} parent=0 // pred_check
    _
  $region11: #{_dal_call.1} parent=0 // pred_check_branch
    %27 = sbr.rel (0) target = $region13
  $region12: #{_dal_call.1} parent=0 // pred_region
    %s28 = sadd.s32 0, 0
    %p29 = scmp.lt.s32.totalorder %s28, 0
    %s30 = scalar_select %p29, %s28, 0
    %p31 = scmp.lt.s32.totalorder %s30, 0
    %s32 = scalar_select %p31, %s30, 0
    %s33 = scalar_lea.vmem %s2, %s32
    %s34 = sadd.s32 0, 0
    %p35 = scmp.lt.s32.totalorder %s34, 0
    %s36 = scalar_select %p35, %s34, 0
  $region13: #{_dal_call.1} parent=0 // pred_fallthru
    _
  // Predicated region
  $region14: #{_dal_call.1} parent=0 // pred_check
    _
  $region15: #{_dal_call.1} parent=0 // pred_check_branch
    %38 = sbr.rel (0) target = $region17
  $region16: #{_dal_call.1} parent=0 // pred_region
    _
  $region17: #{_dal_call.1} parent=0 // pred_fallthru
    _
  // Predicated region
  $region18: #{_dal_call.1} parent=0 // pred_check
    _
  $region19: #{_dal_call.1} parent=0 // pred_check_branch
    %40 = sbr.rel (0) target = $region21
  $region20: #{_dal_call.1} parent=0 // pred_region
    _
  $region21: #{_dal_call.1} parent=0 // pred_fallthru
    _
  // Predicated region
  $region22: #{_dal_call.1} parent=0 // pred_check
    _
  $region23: #{_dal_call.1} parent=0 // pred_check_branch
    %42 = sbr.rel (0) target = $region25
  $region24: #{_dal_call.1} parent=0 // pred_region
    _
  $region25: #{_dal_call.1} parent=0 // pred_fallthru
    _
  %s43 = sadd.s32 0, 0
  %p44 = scmp.lt.s32.totalorder %s43, 0
  %s45 = scalar_select %p44, %s43, 0
  %p46 = scmp.lt.s32.totalorder %s45, 0
  %s47 = scalar_select %p46, %s45, 0
  %s48 = smul.addr %s47, 2
  %s49 = scalar_lea.vmem %s1, %s48
  %s50 = sadd.s32 0, 0
  %p51 = scmp.lt.s32.totalorder %s50, 0
  %s52 = scalar_select %p51, %s50, 0
  %p53 = scmp.lt.s32.totalorder %s52, 0
  %s54 = scalar_select %p53, %s52, 0
  %s55 = scalar_lea.vmem %s2, %s54
  %s56 = sadd.s32 0, 0
  %p57 = scmp.lt.s32.totalorder %s56, 0
  %s58 = scalar_select %p57, %s56, 0
  %p59 = scmp.lt.s32.totalorder %s58, 0
  %s60 = scalar_select %p59, %s58, 0
  %s61 = smul.addr %s60, 2
  %s62 = scalar_lea.vmem %s1, %s61
  %s63 = sadd.s32 0, 0
  %p64 = scmp.lt.s32.totalorder %s63, 0
  %s65 = scalar_select %p64, %s63, 0
  %s66 = sadd.s32 0, 0
  %p67 = scmp.lt.s32.totalorder %s66, 0
  %s68 = scalar_select %p67, %s66, 0
  %p69 = scmp.lt.s32.totalorder %s68, 0
  %s70 = scalar_select %p69, %s68, 0
  %s71 = scalar_lea.vmem %s2, %s70
  %s72 = sadd.s32 0, 0
  %p73 = scmp.lt.s32.totalorder %s72, 0
  %s74 = scalar_select %p73, %s72, 0
  %s75 = sadd.s32 0, 0
  %p76 = scmp.eq.s32.totalorder 0, 0
  // Predicated region
  $region26: #{_dal_call.1} parent=0 // pred_check
    %p77 = pneg %p76
  $region27: #{_dal_call.1} parent=0 // pred_check_branch
    %79 = sbr.rel (%p77) target = $region29
  $region28: #{_dal_call.1} parent=0 // pred_region
    %vm80 = vcmask 0
    %81 = vst.msk [vmem:[#allocation2] sm:$0x1] %vm80, 0.0
  $region29: #{_dal_call.1} parent=0 // pred_fallthru
    _
  %v82 = vld [vmem:[%s3] sm:$0xff]
  %v83 = vld [vmem:[%s3 + $0x8] sm:$0xff]
  %v84 = vld [vmem:[%s3 + $0x10] sm:$0xff]
  %v85 = vld [vmem:[%s3 + $0x18] sm:$0xff]
  %v86 = vld [vmem:[%s62] sm:$0x3]
  %v87 = vld [vmem:[%s4] sm:$0xff]
  %v88 = vld [vmem:[%s4 + $0x8] sm:$0xff]
  %v89 = vld [vmem:[%s4 + $0x10] sm:$0xff]
  %v90 = vld [vmem:[%s4 + $0x18] sm:$0xff]
  %92 = vset.pattern.permute.xlu0 0
  %93 = vperm.xlu0 %92, %v87
  %v94 = vpop.permute.xlu0 %93
  %97 = vset.pattern.permute.xlu0 0
  %98 = vperm.xlu0 %97, %v88
  %v99 = vpop.permute.xlu0 %98
  %102 = vset.pattern.permute.xlu0 0
  %103 = vperm.xlu0 %102, %v89
  %v104 = vpop.permute.xlu0 %103
  %107 = vset.pattern.permute.xlu0 0
  %108 = vperm.xlu0 %107, %v90
  %v109 = vpop.permute.xlu0 %108
  %vm111 = vcmask 523264
  %v113 = vsel %vm111, %v82, 0
  %v116 = vsel %vm111, %v83, 0
  %v119 = vsel %vm111, %v84, 0
  %v122 = vsel %vm111, %v85, 0
  %v125 = vsel %vm111, %v86, 0
  %127 = vmatpush.xpose.msra.mxu0 0.0
  %128 = vmatpush.xpose.msra.mxu0 0.0
  %129 = vmatpush.xpose.msra.mxu0 0.0
  %130 = vmatpush.xpose.msra.mxu0 0.0
  %131 = vmatpush.xpose.msra.mxu0 0.0
  %132 = vmatpush.xpose.msra.mxu0 0.0
  %133 = vmatpush.xpose.msra.mxu0 0.0
  %134 = vmatpush.xpose.msra.mxu0 0.0
  %135 = vmatpush.xpose.msra.mxu0 0.0
  %136 = vmatpush.xpose.msra.mxu0 0.0
  %137 = vmatpush.xpose.msra.mxu0 0.0
  %138 = vmatpush.xpose.msra.mxu0 0.0
  %139 = vmatpush.xpose.msra.mxu0 0.0
  %140 = vmatpush.xpose.msra.mxu0 0.0
  %141 = vmatpush.xpose.msra.mxu0 0.0
  %142 = vmatpush.xpose.msra.mxu0 %v125
  %143 = vmatmul.f32.gmra.mxu0 %v113
  %v144 = vpop.f32.mrf.mxu0
  %v145 = vadd.f32 %v94, %v144
  %146 = vmatmul.f32.gmra.mxu0 %v116
  %v147 = vpop.f32.mrf.mxu0
  %v148 = vadd.f32 %v99, %v147
  %149 = vmatmul.f32.gmra.mxu0 %v119
  %v150 = vpop.f32.mrf.mxu0
  %v151 = vadd.f32 %v104, %v150
  %152 = vmatmul.f32.gmra.mxu0 %v122
  %v153 = vpop.f32.mrf.mxu0
  %v154 = vadd.f32 %v109, %v153
  %155 = vdwg.mxu0
  %v156 = vmax.f32 %v145, 0.0
  %v157 = vmax.f32 %v148, 0.0
  %v158 = vmax.f32 %v151, 0.0
  %v159 = vmax.f32 %v154, 0.0
  %v160 = vld [vmem:[%s5] sm:$0xff]
  %v161 = vld [vmem:[%s5 + $0x8] sm:$0xff]
  %v162 = vld [vmem:[%s5 + $0x10] sm:$0xff]
  %v163 = vld [vmem:[%s5 + $0x18] sm:$0xff]
  %165 = vset.pattern.permute.xlu0 0
  %166 = vperm.xlu0 %165, %v160
  %v167 = vpop.permute.xlu0 %166
  %170 = vset.pattern.permute.xlu0 0
  %171 = vperm.xlu0 %170, %v161
  %v172 = vpop.permute.xlu0 %171
  %175 = vset.pattern.permute.xlu0 0
  %176 = vperm.xlu0 %175, %v162
  %v177 = vpop.permute.xlu0 %176
  %180 = vset.pattern.permute.xlu0 0
  %181 = vperm.xlu0 %180, %v163
  %v182 = vpop.permute.xlu0 %181
  %v184 = vmul.f32 %v156, %v167
  %v185 = vmul.f32 %v157, %v172
  %v186 = vmul.f32 %v158, %v177
  %v187 = vmul.f32 %v159, %v182
  %vm188 = vcmask 15360
  %v189 = vsel %vm188, %v184, 0.0
  %v190 = vsel %vm188, %v185, 0.0
  %v191 = vadd.f32 %v189, %v190
  %v192 = vsel %vm188, %v186, 0.0
  %v193 = vadd.f32 %v191, %v192
  %v194 = vsel %vm188, %v187, 0.0
  %v195 = vadd.f32 %v193, %v194
  %v196 = vrot.slane %v195, 4
  %v197 = vadd.f32 %v195, %v196
  %v198 = vrot.slane %v197, 2
  %v199 = vadd.f32 %v197, %v198
  %v200 = vrot.slane %v199, 1
  %v201 = vadd.f32 %v199, %v200
  %s202 = sld [smem:[#allocation3]]
  %v203 = vstv %s202
  %v204 = vadd.f32 %v201, %v203
  %v205 = vld [vmem:[%s71] sm:$0x1]
  %v206 = vmax.f32 %v204, 0.0
  %v207 = vmul.f32 %v204, %v205
  %v208 = vsub.f32 %v206, %v207
  %v209 = vand.u32 2147483647, %v204
  %v210 = vsub.f32 0.0, %v209
  %v211 = vmul.f32 %v210, 1.442695
  %v212 = vpow.pop %v211
  %v213 = vadd.f32 %v212, 1.0
  %v214 = vlog2.pop %v213
  %v215 = vmul.f32 %v214, 0.6931472
  %v216 = vmul.f32 -0.5, %v212
  %v217 = vadd.f32 %v216, 1.0
  %v218 = vmul.f32 %v217, %v212
  %v219 = vand.u32 2147483647, %v212
  %vm220 = vcmp.lt.f32.partialorder %v219, 0.0004427343
  %v221 = vsel %vm220, %v218, %v215
  %v222 = vadd.f32 %v208, %v221
  %v223 = vlaneseq
  %v224 = vand.u32 %v223, 127
  %s225 = smul.u32 %s75, 2
  %v226 = vstv %s225
  %v227 = vadd.s32 %v224, %v226
  %vm228 = vcmp.lt.s32.totalorder %v227, 2
  %v229 = vsel %vm228, %v222, 0.0
  %v230 = vld [vmem:[#allocation2] sm:$0x1]
  %vm231 = vcmask 8192
  %v232 = vsel %vm231, %v229, 0.0
  %233 = vadd.xlane.f32.xlu0 %v232
  %v234 = vpop.xlane.xlu0 %233
  %v235 = vadd.f32 %v230, %v234
  %vm236 = vcmask 0
  %237 = vst.msk [vmem:[#allocation2] sm:$0x1] %vm236, %v235
  // Predicated region
  $region30: #{_dal_call.1} parent=0 // pred_check
    %p238 = pneg %p76
  $region31: #{_dal_call.1} parent=0 // pred_check_branch
    %240 = sbr.rel (%p238) target = $region33
  $region32: #{_dal_call.1} parent=0 // pred_region
    %v241 = vld [vmem:[#allocation2] sm:$0x1]
    %243 = vset.pattern.permute.xlu0 0
    %244 = vperm.xlu0 %243, %v241
    %v245 = vpop.permute.xlu0 %244
    %v247 = vperm.slane %v245, 0
    %248 = vst [vmem:[%s6] sm:$0x1] %v247
  $region33: #{_dal_call.1} parent=0 // pred_fallthru
    _
  // Predicated region
  $region34: #{_dal_call.1} parent=0 // pred_check
    _
  $region35: #{_dal_call.1} parent=0 // pred_check_branch
    %250 = sbr.rel (0) target = $region37
  $region36: #{_dal_call.1} parent=0 // pred_region
    _
  $region37: #{_dal_call.1} parent=0 // pred_fallthru
    _
  // Predicated region
  $region38: #{_dal_call.1} parent=0 // pred_check
    _
  $region39: #{_dal_call.1} parent=0 // pred_check_branch
    %252 = sbr.rel (0) target = $region41
  $region40: #{_dal_call.1} parent=0 // pred_region
    _
  $region41: #{_dal_call.1} parent=0 // pred_fallthru
    _

</llo_original>
